<compile_context>
chip_gen: v6e
topology: v6e:2x2x1
jax: 0.10.0
libtpu: 0.0.40
codegen_flags: <defaults>
</compile_context>

<pallas_src>
import functools

import jax
import jax.numpy as jnp
from jax.experimental import pallas as pl
from jax.experimental.pallas import tpu as pltpu


# ----------------------------------------------------------------------------
# Kernels
# ----------------------------------------------------------------------------
def _fused_bn_relu_kernel(x_ref, g_ref, b_ref, o_ref, *, eps, count):
    """Single-pass BN+ReLU: x resident in VMEM, centered (exact) variance."""
    x = x_ref[...].astype(jnp.float32)                       # (N, C, L)
    s = jnp.sum(x, axis=2, keepdims=True)                    # lane reduce (N, C, 1)
    mean = jnp.sum(s, axis=0, keepdims=True) / count         # (1, C, 1)
    xc = x - mean
    sq = jnp.sum(xc * xc, axis=2, keepdims=True)             # (N, C, 1)
    var = jnp.sum(sq, axis=0, keepdims=True) / count         # (1, C, 1) biased
    scale = g_ref[...] / jnp.sqrt(var + eps)                  # (1, C, 1)
    y = xc * scale + b_ref[...]
    o_ref[...] = jnp.maximum(y, 0.0).astype(o_ref.dtype)


def _row_stats_kernel(x_ref, stat_ref):
    """Per-row sum / sum-of-squares over the lane axis; merged (TR, 2) output."""
    x = x_ref[...].astype(jnp.float32)                        # (TR, L)
    stat_ref[:, 0:1] = jnp.sum(x, axis=1, keepdims=True)
    stat_ref[:, 1:2] = jnp.sum(x * x, axis=1, keepdims=True)


def _bn_relu_rows_kernel(x_ref, sb_ref, o_ref):
    """y = relu(scale * x + bias); scale/bias folded per row as (TR, 2)."""
    x = x_ref[...].astype(jnp.float32)                        # (TR, L)
    y = x * sb_ref[:, 0:1] + sb_ref[:, 1:2]
    o_ref[...] = jnp.maximum(y, 0.0).astype(o_ref.dtype)


def _bn_relu_wide_kernel(x_ref, sb_ref, o_ref):
    """y = relu(scale * x + bias) on the (N, C*H*W) view; sb is resident (2, CL)."""
    x = x_ref[...].astype(jnp.float32)                        # (TN, CL)
    y = x * sb_ref[0:1, :] + sb_ref[1:2, :]
    o_ref[...] = jnp.maximum(y, 0.0).astype(o_ref.dtype)


# ----------------------------------------------------------------------------
# Sizing helpers
# ----------------------------------------------------------------------------
def _vmem_capacity_bytes():
    """Per-core VMEM capacity; conservative fallback = 64 MiB (v7x per-TC)."""
    try:
        info = pltpu.get_tpu_info()
        cap = getattr(info, "vmem_capacity_bytes", None)
        if cap:
            return int(cap)
    except Exception:
        pass
    return 64 * 1024 * 1024


def _sublane(dtype):
    """Native sublane tile for the dtype (8 for 4B, 16 for 2B, 32 for 1B)."""
    size = jnp.dtype(dtype).itemsize
    if size >= 4:
        return 8
    if size == 2:
        return 16
    return 32


def _pick_tile_rows(n_rows, n_lanes, itemsize, sub, budget_bytes):
    """Rows per block: bytes-driven, dtype-aware sublane multiple (or full extent),
    with a guard that keeps >= 2 grid steps so v7x's 2 TensorCores both get work."""
    bytes_per_row = max(1, n_lanes * itemsize)
    rows = (budget_bytes // bytes_per_row // sub) * sub
    rows = max(sub, rows)
    rows = min(rows, n_rows)
    if n_rows > sub and -(-n_rows // rows) < 2:
        half = (n_rows + 1) // 2
        rows = min(n_rows, max(sub, ((half + sub - 1) // sub) * sub))
    return rows


# ----------------------------------------------------------------------------
# Paths
# ----------------------------------------------------------------------------
def _fused(x, gamma, beta, eps, vmem_limit):
    N, C, H, W = x.shape
    L = H * W
    x3 = x.reshape(N, C, L)                                   # contiguous view
    g3 = gamma.astype(jnp.float32).reshape(1, C, 1)
    b3 = beta.astype(jnp.float32).reshape(1, C, 1)
    out = pl.pallas_call(
        functools.partial(_fused_bn_relu_kernel, eps=eps, count=N * L),
        out_shape=jax.ShapeDtypeStruct((N, C, L), x.dtype),
        compiler_params=pltpu.CompilerParams(vmem_limit_bytes=vmem_limit),
    )(x3, g3, b3)
    return out.reshape(N, C, H, W)


def _two_pass(x, gamma, beta, eps, wide, vmem_limit, block_budget):
    N, C, H, W = x.shape
    R, L = N * C, H * W
    xf = x.reshape(R, L)                                      # contiguous view
    dt = x.dtype
    itemsize = jnp.dtype(dt).itemsize
    sub = _sublane(dt)
    cparams = pltpu.CompilerParams(dimension_semantics=("parallel",),
                                   vmem_limit_bytes=vmem_limit)

    # ---- Pass 1: per-(n, c) sum / sum-of-squares over the H*W lanes.
    # TODO(synk): if H*W alone is so large that even an 8-row block overflows
    # VMEM, pass 1 would also need lane tiling with accumulation; not needed
    # for realistic activation sizes.
    TR = _pick_tile_rows(R, L, itemsize, sub, block_budget)
    stats = pl.pallas_call(
        _row_stats_kernel,
        out_shape=jax.ShapeDtypeStruct((R, 2), jnp.float32),
        grid=(pl.cdiv(R, TR),),
        in_specs=[pl.BlockSpec((TR, L), lambda i: (i, 0))],
        out_specs=pl.BlockSpec((TR, 2), lambda i: (i, 0)),
        compiler_params=cparams,
    )(xf)

    # ---- Tiny per-channel combine (C scalars) — plain JAX glue.
    count = N * H * W
    ch = stats.reshape(N, C, 2).sum(axis=0)                   # (C, 2)
    mean = ch[:, 0] / count
    # TODO(synk): E[x^2] - mean^2 can cancel catastrophically when |mean| >> std;
    # clamp at 0 (the fused path uses an exact centered reduction instead).
    var = jnp.maximum(ch[:, 1] / count - mean * mean, 0.0)    # biased variance
    scale_c = gamma.astype(jnp.float32) * jax.lax.rsqrt(var + eps)
    bias_c = beta.astype(jnp.float32) - mean * scale_c

    # ---- Pass 2: y = relu(scale * x + bias), lane-dense, tiled + pipelined.
    if wide:
        # (N, C*H*W) view: lane-dense even for tiny / unaligned H*W.
        CL = C * L
        xw = x.reshape(N, CL)
        sb = jnp.stack([jnp.repeat(scale_c, L), jnp.repeat(bias_c, L)], axis=0)
        TN = _pick_tile_rows(N, CL, itemsize, sub, block_budget)
        out = pl.pallas_call(
            _bn_relu_wide_kernel,
            out_shape=jax.ShapeDtypeStruct((N, CL), dt),
            grid=(pl.cdiv(N, TN),),
            in_specs=[pl.BlockSpec((TN, CL), lambda i: (i, 0)),
                      # grid-invariant: DMA'd once, stays resident in VMEM.
                      pl.BlockSpec((2, CL), lambda i: (0, 0))],
            out_specs=pl.BlockSpec((TN, CL), lambda i: (i, 0)),
            compiler_params=cparams,
        )(xw, sb)
        return out.reshape(N, C, H, W)

    # (N*C, H*W) view with per-row folded scale/bias (row = n*C + c).
    sb_r = jnp.broadcast_to(
        jnp.stack([scale_c, bias_c], axis=-1)[None], (N, C, 2)).reshape(R, 2)
    out = pl.pallas_call(
        _bn_relu_rows_kernel,
        out_shape=jax.ShapeDtypeStruct((R, L), dt),
        grid=(pl.cdiv(R, TR),),
        in_specs=[pl.BlockSpec((TR, L), lambda i: (i, 0)),
                  pl.BlockSpec((TR, 2), lambda i: (i, 0))],
        out_specs=pl.BlockSpec((TR, L), lambda i: (i, 0)),
        compiler_params=cparams,
    )(xf, sb_r)
    return out.reshape(N, C, H, W)


# ----------------------------------------------------------------------------
# Public entry point
# ----------------------------------------------------------------------------
def naive_bn(x, gamma, beta, eps=1e-5, path=None):
    """NaiveBN forward: training-mode BatchNorm2d (batch stats) + ReLU.

    x: (N, C, H, W).  gamma, beta: (C,).  Returns NCHW in x.dtype.
    path: None (auto) | "fused" | "narrow" | "wide" — exposed for testing.
    """
    N, C, H, W = x.shape
    R, L = N * C, H * W
    itemsize = jnp.dtype(x.dtype).itemsize
    sub = _sublane(x.dtype)

    vmem_cap = _vmem_capacity_bytes()                 # 64 MiB (v7x) / 128 MiB (v5e, v6e)
    vmem_limit = min((vmem_cap * 3) // 4, 100 * 1024 * 1024)
    # Pass-2 footprint ~ 2x(in) + 2x(out) double-buffered blocks + resident bits.
    block_budget = max(2 * 1024 * 1024, min(vmem_limit // 6, 8 * 1024 * 1024))

    if path is None:
        x_f32_bytes = 4 * R * L
        if 4 * x_f32_bytes + (1 << 20) <= vmem_limit:
            path = "fused"                            # one HBM read + one write
        elif L < 256 or L % 128 != 0:
            path = "wide"                             # keep stores lane-dense
        else:
            path = "narrow"
        if path == "wide" and min(N, sub) * C * L * itemsize > block_budget:
            path = "narrow"                           # wide blocks wouldn't fit

    if path == "fused":
        return _fused(x, gamma, beta, eps, vmem_limit)
    return _two_pass(x, gamma, beta, eps, wide=(path == "wide"),
                     vmem_limit=vmem_limit, block_budget=block_budget)


# ----------------------------------------------------------------------------
# Reference + self-test
# ----------------------------------------------------------------------------
def _reference(x, gamma, beta, eps=1e-5):
    """Pure-JAX reference of training-mode BatchNorm2d + ReLU."""
    mean = x.mean(axis=(0, 2, 3), keepdims=True)
    var = ((x - mean) ** 2).mean(axis=(0, 2, 3), keepdims=True)  # biased
    y = (x - mean) / jnp.sqrt(var + eps)
    y = y * gamma[None, :, None, None] + beta[None, :, None, None]
    return jnp.maximum(y, 0.0)


if __name__ == "__main__":
    key = jax.random.PRNGKey(0)
    shapes = [(2, 4, 16, 16),   # lane-aligned spatial
              (2, 3, 7, 7)]     # small / unaligned spatial
    for (N, C, H, W) in shapes:
        key, sk = jax.random.split(key)
        x = jax.random.normal(sk, (N, C, H, W), jnp.float32) * 0.5 + 0.3
        # BatchNorm2d init from the module's _initialize_weights: gamma=1, beta=0.
        gamma = jnp.ones((C,), jnp.float32)
        beta = jnp.zeros((C,), jnp.float32)
        ref = _reference(x, gamma, beta)
        for p in (None, "narrow", "wide"):            # None resolves to "fused" here
            fwd = jax.jit(functools.partial(naive_bn, path=p))
            out = jax.block_until_ready(fwd(x, gamma, beta))
            assert out.shape == (N, C, H, W), (p, out.shape)
            err = float(jnp.abs(out - ref).max())
            assert jnp.allclose(out, ref, atol=1e-4, rtol=1e-4), (p, (N, C, H, W), err)
    print("KERNEL_OK")
</pallas_src>

<mosaic_0001>
module attributes {stable_mosaic.version = 11 : i64} {
  func.func @_fused_bn_relu_kernel(%arg0: memref<2x4x256xf32, #tpu.memory_space<vmem>>, %arg1: memref<1x4x1xf32, #tpu.memory_space<vmem>>, %arg2: memref<1x4x1xf32, #tpu.memory_space<vmem>>, %arg3: memref<2x4x256xf32, #tpu.memory_space<vmem>>) attributes {dimension_semantics = [], scalar_prefetch = 0 : i64, scratch_operands = 0 : i64, tpu.core_type = #tpu.core_type<tc>} {
    %c0 = arith.constant 0 : index
    %c0_0 = arith.constant 0 : index
    %c0_1 = arith.constant 0 : index
    %0 = vector.load %arg0[%c0, %c0_0, %c0_1] : memref<2x4x256xf32, #tpu.memory_space<vmem>>, vector<2x4x256xf32>
    %cst = arith.constant dense<0.000000e+00> : vector<2x4xf32>
    %1 = vector.multi_reduction <add>, %0, %cst [2] : vector<2x4x256xf32> to vector<2x4xf32>
    %2 = vector.shape_cast %1 : vector<2x4xf32> to vector<2x4x1xf32>
    %cst_2 = arith.constant dense<0.000000e+00> : vector<4x1xf32>
    %3 = vector.multi_reduction <add>, %2, %cst_2 [0] : vector<2x4x1xf32> to vector<4x1xf32>
    %4 = vector.shape_cast %3 : vector<4x1xf32> to vector<1x4x1xf32>
    %cst_3 = arith.constant 5.120000e+02 : f32
    %5 = vector.broadcast %cst_3 : f32 to vector<1x4x1xf32>
    %6 = arith.divf %4, %5 : vector<1x4x1xf32>
    %7 = vector.broadcast %6 : vector<1x4x1xf32> to vector<2x4x256xf32>
    %8 = arith.subf %0, %7 : vector<2x4x256xf32>
    %9 = arith.mulf %8, %8 : vector<2x4x256xf32>
    %cst_4 = arith.constant dense<0.000000e+00> : vector<2x4xf32>
    %10 = vector.multi_reduction <add>, %9, %cst_4 [2] : vector<2x4x256xf32> to vector<2x4xf32>
    %11 = vector.shape_cast %10 : vector<2x4xf32> to vector<2x4x1xf32>
    %cst_5 = arith.constant dense<0.000000e+00> : vector<4x1xf32>
    %12 = vector.multi_reduction <add>, %11, %cst_5 [0] : vector<2x4x1xf32> to vector<4x1xf32>
    %13 = vector.shape_cast %12 : vector<4x1xf32> to vector<1x4x1xf32>
    %cst_6 = arith.constant 5.120000e+02 : f32
    %14 = vector.broadcast %cst_6 : f32 to vector<1x4x1xf32>
    %15 = arith.divf %13, %14 : vector<1x4x1xf32>
    %c0_7 = arith.constant 0 : index
    %c0_8 = arith.constant 0 : index
    %c0_9 = arith.constant 0 : index
    %16 = vector.load %arg1[%c0_7, %c0_8, %c0_9] : memref<1x4x1xf32, #tpu.memory_space<vmem>>, vector<1x4x1xf32>
    %cst_10 = arith.constant 9.99999974E-6 : f32
    %17 = vector.broadcast %cst_10 : f32 to vector<1x4x1xf32>
    %18 = arith.addf %15, %17 : vector<1x4x1xf32>
    %19 = math.sqrt %18 : vector<1x4x1xf32>
    %20 = arith.divf %16, %19 : vector<1x4x1xf32>
    %21 = vector.broadcast %20 : vector<1x4x1xf32> to vector<2x4x256xf32>
    %22 = arith.mulf %8, %21 : vector<2x4x256xf32>
    %c0_11 = arith.constant 0 : index
    %c0_12 = arith.constant 0 : index
    %c0_13 = arith.constant 0 : index
    %23 = vector.load %arg2[%c0_11, %c0_12, %c0_13] : memref<1x4x1xf32, #tpu.memory_space<vmem>>, vector<1x4x1xf32>
    %24 = vector.broadcast %23 : vector<1x4x1xf32> to vector<2x4x256xf32>
    %25 = arith.addf %22, %24 : vector<2x4x256xf32>
    %cst_14 = arith.constant 0.000000e+00 : f32
    %26 = vector.broadcast %cst_14 : f32 to vector<2x4x256xf32>
    %27 = arith.maximumf %25, %26 : vector<2x4x256xf32>
    %c0_15 = arith.constant 0 : index
    %c0_16 = arith.constant 0 : index
    %c0_17 = arith.constant 0 : index
    %28 = vector.load %arg3[%c0_15, %c0_16, %c0_17] : memref<2x4x256xf32, #tpu.memory_space<vmem>>, vector<2x4x256xf32>
    tpu.vector_store %arg3[%c0_15, %c0_16, %c0_17], %27 {strides = array<i32>} : memref<2x4x256xf32, #tpu.memory_space<vmem>>, vector<2x4x256xf32>,
    return
  }
}

</mosaic_0001>

<llo_original>
// kernel: naive_bn.1
$region0: #{naive_bn.1}
  #allocation0 [shape = 'u32[]', space=smem, size = 0x4, offset = 0x4, fixed_abs, tag = 'smem constant byte address 0x4 - core index']
  #allocation1 [shape = 'u32[144,128]{1,0:T(1,128)}', space=vmem, size = 0x12000, scoped, tag = 'internal scratch']
  %s0 = inlined_call_operand.vmem [shape: f32[2,4,256], index: 0, kind: input, shape index: {}]
  %s1 = inlined_call_operand.vmem [shape: f32[1,4,1], index: 1, kind: input, shape index: {}]
  %s2 = inlined_call_operand.vmem [shape: f32[1,4,1], index: 2, kind: input, shape index: {}]
  %s3 = inlined_call_operand.vmem [shape: f32[2,4,256], index: 3, kind: output, shape index: {}]
  %s4 = sld [smem:[#allocation0]]
  $region22: #{naive_bn.1} parent=0
    _
  %s6 = ssub.s32 1, %s4
  %s7 = scalar_select 0, %s6, %s4
  // Predicated region
  $region2: #{naive_bn.1} parent=0 // pred_check
    _
  $region3: #{naive_bn.1} parent=0 // pred_check_branch
    %9 = sbr.rel (0) target = $region5
  $region4: #{naive_bn.1} parent=0 // pred_region
    _
  $region5: #{naive_bn.1} parent=0 // pred_fallthru
    _
  // Predicated region
  $region6: #{naive_bn.1} parent=0 // pred_check
    _
  $region7: #{naive_bn.1} parent=0 // pred_check_branch
    %11 = sbr.rel (0) target = $region9
  $region8: #{naive_bn.1} parent=0 // pred_region
    _
  $region9: #{naive_bn.1} parent=0 // pred_fallthru
    _
  // Predicated region
  $region10: #{naive_bn.1} parent=0 // pred_check
    _
  $region11: #{naive_bn.1} parent=0 // pred_check_branch
    %13 = sbr.rel (0) target = $region13
  $region12: #{naive_bn.1} parent=0 // pred_region
    _
  $region13: #{naive_bn.1} parent=0 // pred_fallthru
    _
  %v14 = vld [vmem:[%s0] sm:$0xff]
  %v15 = vld [vmem:[%s0 + $0x8] sm:$0xff]
  %v18 = vcombine.high %v14, %v14
  %v19 = vcombine.high %v15, %v15
  %vm22 = vcmask 1043456
  %v23 = vsel %vm22, %v14, 0.0
  %v24 = vsel %vm22, %v18, 0.0
  %v25 = vadd.f32 %v23, %v24
  %26 = vadd.xlane.f32.xlu0 %v25
  %v27 = vpop.xlane.xlu0 %26
  %v28 = vsel %vm22, %v15, 0.0
  %v29 = vsel %vm22, %v19, 0.0
  %v30 = vadd.f32 %v28, %v29
  %31 = vadd.xlane.f32.xlu0 %v30
  %v32 = vpop.xlane.xlu0 %31
  %v33 = vsel %vm22, %v27, 0.0
  %v34 = vsel %vm22, %v32, 0.0
  %v35 = vadd.f32 %v33, %v34
  %v36 = vrcp.pop 512.0
  %v37 = vmul.f32 %v35, %v36
  %v40 = vunpack.c.l.s4 839922192
  %v41 = vunpack.c.0.s8 %v40
  %v42 = vlaneseq
  %v43 = vshrl.u32 %v42, 7
  %v44 = vsub.s32 %v41, %v43
  %v45 = vrot.slane %v37, %v44
  %v47 = vsub.f32 %v14, %v45
  %v48 = vsub.f32 %v15, %v45
  %v49 = vmul.f32 %v47, %v47
  %v50 = vmul.f32 %v48, %v48
  %v53 = vcombine.high %v49, %v49
  %v54 = vcombine.high %v50, %v50
  %v57 = vsel %vm22, %v49, 0.0
  %v58 = vsel %vm22, %v53, 0.0
  %v59 = vadd.f32 %v57, %v58
  %60 = vadd.xlane.f32.xlu0 %v59
  %v61 = vpop.xlane.xlu0 %60
  %v62 = vsel %vm22, %v50, 0.0
  %v63 = vsel %vm22, %v54, 0.0
  %v64 = vadd.f32 %v62, %v63
  %65 = vadd.xlane.f32.xlu0 %v64
  %v66 = vpop.xlane.xlu0 %65
  %v67 = vsel %vm22, %v61, 0.0
  %v68 = vsel %vm22, %v66, 0.0
  %v69 = vadd.f32 %v67, %v68
  %v70 = vmul.f32 %v69, %v36
  %v71 = vld [vmem:[%s1] sm:$0xf]
  %v72 = vadd.f32 %v70, 1e-05
  %v73 = vrsqrt.pop %v72
  %v74 = vmul.f32 %v72, %v73
  %vm75 = vcmp.eq.f32.partialorder %v72, inf
  %v76 = vsel %vm75, %v72, %v74
  %vm77 = vcmp.eq.f32.partialorder %v72, 0.0
  %v78 = vand.u32 %v72, 2147483648
  %v79 = vsel %vm77, %v78, %v76
  %v80 = vrcp.pop %v79
  %v81 = vmul.f32 %v71, %v80
  %83 = vset.pattern.permute.xlu0 0
  %84 = vperm.xlu0 %83, %v81
  %v85 = vpop.permute.xlu0 %84
  %v87 = vunpack.c.l.s4 839922192
  %v88 = vunpack.c.0.s8 %v87
  %v89 = vlaneseq
  %v90 = vshrl.u32 %v89, 7
  %v91 = vsub.s32 %v88, %v90
  %v92 = vrot.slane %v85, %v91
  %v94 = vmul.f32 %v47, %v92
  %v95 = vmul.f32 %v48, %v92
  %v96 = vld [vmem:[%s2] sm:$0xf]
  %98 = vset.pattern.permute.xlu0 0
  %99 = vperm.xlu0 %98, %v96
  %v100 = vpop.permute.xlu0 %99
  %v102 = vunpack.c.l.s4 839922192
  %v103 = vunpack.c.0.s8 %v102
  %v104 = vlaneseq
  %v105 = vshrl.u32 %v104, 7
  %v106 = vsub.s32 %v103, %v105
  %v107 = vrot.slane %v100, %v106
  %v109 = vadd.f32 %v94, %v107
  %v110 = vadd.f32 %v95, %v107
  %v111 = vmax.f32 %v109, 0.0
  %v112 = vmax.f32 %v110, 0.0
  %113 = vst [vmem:[%s3] sm:$0xff] %v111
  %114 = vst [vmem:[%s3 + $0x8] sm:$0xff] %v112
  // Predicated region
  $region14: #{naive_bn.1} parent=0 // pred_check
    _
  $region15: #{naive_bn.1} parent=0 // pred_check_branch
    %116 = sbr.rel (0) target = $region17
  $region16: #{naive_bn.1} parent=0 // pred_region
    _
  $region17: #{naive_bn.1} parent=0 // pred_fallthru
    _
  // Predicated region
  $region18: #{naive_bn.1} parent=0 // pred_check
    _
  $region19: #{naive_bn.1} parent=0 // pred_check_branch
    %118 = sbr.rel (0) target = $region21
  $region20: #{naive_bn.1} parent=0 // pred_region
    _
  $region21: #{naive_bn.1} parent=0 // pred_fallthru
    _

</llo_original>
